<compile_context>
chip_gen: v7x
topology: tpu7x:2x2x1
jax: 0.10.0
libtpu: 0.0.40
codegen_flags: <defaults>
</compile_context>

<pallas_src>
import functools

import numpy as np
import jax
import jax.numpy as jnp
from jax.experimental import pallas as pl
from jax.experimental.pallas import tpu as pltpu


_LANE = 128
_SUBLANE = 16                     # bf16 sublane tile (superset of f32's 8)
_VMEM_LIMIT = 32 * 1024 * 1024


def _round_up(x, m):
    return ((x + m - 1) // m) * m


# ---------------------------------------------------------------------------
# Projection kernel:  S[r*n_pad:(r+1)*n_pad, :] = X @ W[r]     (r unrolled)
# Tail rows of S (padding up to the aggregation k-tile) are zeroed so the
# aggregation never touches uninitialized memory.
# ---------------------------------------------------------------------------
def _proj_kernel(x_ref, w_ref, s_ref, *, num_rels, n_pad, k_rows):
    x = x_ref[...]
    for r in range(num_rels):          # static unroll; R is small here
        xw = jnp.dot(x, w_ref[r], preferred_element_type=jnp.float32)
        s_ref[pl.ds(r * n_pad, n_pad), :] = xw.astype(s_ref.dtype)
    tail = k_rows - num_rels * n_pad
    if tail > 0:
        s_ref[pl.ds(num_rels * n_pad, tail), :] = jnp.zeros(
            (tail, s_ref.shape[1]), s_ref.dtype)


# ---------------------------------------------------------------------------
# Aggregation kernel: out = relu?(A @ S + bias) as a tiled MXU matmul.
# grid = (row tiles ["parallel" -> megacore], K tiles ["arbitrary", last]);
# f32 VMEM scratch accumulator with pl.when init / finalize.
# ---------------------------------------------------------------------------
def _agg_kernel(a_ref, s_ref, b_ref, o_ref, acc_ref, *, apply_relu):
    k = pl.program_id(1)

    @pl.when(k == 0)
    def _():
        acc_ref[...] = jnp.zeros_like(acc_ref)

    acc_ref[...] += jnp.dot(a_ref[...], s_ref[...],
                            preferred_element_type=jnp.float32)

    @pl.when(k == pl.num_programs(1) - 1)
    def _():
        out = acc_ref[...] + b_ref[...]
        if apply_relu:
            out = jnp.maximum(out, 0.0)
        o_ref[...] = out.astype(o_ref.dtype)


# ---------------------------------------------------------------------------
# One relational graph-conv layer: out = relu?( A @ stack_r(X @ W[r]) + b )
#   x: (N, F)   w: (R, F, H)   b: (H,)   a: (M, R*N)   ->   (M, H)
# ---------------------------------------------------------------------------
def relational_layer(x, w, b, a, *, num_rels, relu,
                     compute_dtype=jnp.bfloat16, adj_dtype=None,
                     out_dtype=None):
    n, f = x.shape
    m, rk = a.shape
    r_, fw, h = w.shape
    assert r_ == num_rels and fw == f and rk == num_rels * n
    assert b.shape == (h,)
    if adj_dtype is None:
        adj_dtype = compute_dtype      # exact for 0/1 A; pass f32 if normalized
    if out_dtype is None:
        out_dtype = compute_dtype

    # --- tile / pad sizes ---
    f_p = _round_up(f, _LANE)
    h_p = _round_up(h, _LANE)
    n_p = _round_up(n, _SUBLANE)       # per-relation stride of stacked S rows
    if m <= _SUBLANE:
        tm = _SUBLANE
    else:                              # >=2 row tiles so both v7x TCs get work
        tm = min(256, _round_up((m + 1) // 2, _SUBLANE))
    m_p = _round_up(m, tm)
    tk = min(512, _round_up(num_rels * n_p, _LANE))
    k_p = _round_up(num_rels * n_p, tk)

    # --- host-side padding / casts (no transpose of A; pads are no-ops when
    #     the sample sizes are already 16-aligned) ---
    xp = jnp.pad(x.astype(compute_dtype), ((0, n_p - n), (0, f_p - f)))
    wp = jnp.pad(w.astype(compute_dtype), ((0, 0), (0, f_p - f), (0, h_p - h)))
    bp = jnp.pad(b.astype(jnp.float32), (0, h_p - h)).reshape(1, h_p)
    a3 = jnp.pad(a.astype(adj_dtype).reshape(m, num_rels, n),
                 ((0, m_p - m), (0, 0), (0, n_p - n)))
    ap = jnp.pad(a3.reshape(m_p, num_rels * n_p),
                 ((0, 0), (0, k_p - num_rels * n_p)))

    # --- projection: S = stack_r(X @ W[r]) -> (k_p, h_p) ---
    # TODO(synk): grid this over relations / feature tiles for very large
    #             F, N or num_rels (currently one VMEM-resident step).
    s = pl.pallas_call(
        functools.partial(_proj_kernel, num_rels=num_rels, n_pad=n_p,
                          k_rows=k_p),
        out_shape=jax.ShapeDtypeStruct((k_p, h_p), compute_dtype),
        grid_spec=pltpu.PrefetchScalarGridSpec(
            num_scalar_prefetch=0,
            grid=(1,),
            in_specs=[
                pl.BlockSpec((n_p, f_p), lambda i: (0, 0)),                # X
                pl.BlockSpec((num_rels, f_p, h_p), lambda i: (0, 0, 0)),   # W
            ],
            out_specs=pl.BlockSpec((k_p, h_p), lambda i: (0, 0)),
        ),
        compiler_params=pltpu.CompilerParams(
            dimension_semantics=("arbitrary",),
            vmem_limit_bytes=_VMEM_LIMIT),
    )(xp, wp)

    # --- aggregation: out = relu?(A @ S + b), tiled rows x K matmul ---
    out_p = pl.pallas_call(
        functools.partial(_agg_kernel, apply_relu=relu),
        out_shape=jax.ShapeDtypeStruct((m_p, h_p), out_dtype),
        grid_spec=pltpu.PrefetchScalarGridSpec(
            num_scalar_prefetch=0,
            grid=(m_p // tm, k_p // tk),
            in_specs=[
                pl.BlockSpec((tm, tk), lambda i, k: (i, k)),    # A tile
                pl.BlockSpec((tk, h_p), lambda i, k: (k, 0)),   # S tile
                pl.BlockSpec((1, h_p), lambda i, k: (0, 0)),    # bias (1 fetch)
            ],
            out_specs=pl.BlockSpec((tm, h_p), lambda i, k: (i, 0)),
            scratch_shapes=[pltpu.VMEM((tm, h_p), jnp.float32)],
        ),
        compiler_params=pltpu.CompilerParams(
            dimension_semantics=("parallel", "arbitrary"),
            vmem_limit_bytes=_VMEM_LIMIT),
    )(ap, s, bp)
    return out_p[:m, :h]


# ---------------------------------------------------------------------------
# Module forward (training mini-batch branch, basis-decomposed weights)
# ---------------------------------------------------------------------------
def mini_batch_ergcn_forward(params, X_batch, A_en_sliced, *, num_rels,
                             compute_dtype=jnp.bfloat16, adj_dtype=None):
    A_0, A_1 = A_en_sliced[0], A_en_sliced[1]
    # Basis decomposition of relation weights (tiny einsums; host/XLA glue).
    W1 = jnp.einsum('rb,beh->reh', params['comp1'], params['bases1'])
    W2 = jnp.einsum('rb,bhc->rhc', params['comp2'], params['bases2'])
    h1 = relational_layer(X_batch, W1, params['bias1'], A_0,
                          num_rels=num_rels, relu=True,
                          compute_dtype=compute_dtype, adj_dtype=adj_dtype,
                          out_dtype=compute_dtype)
    out = relational_layer(h1, W2, params['bias2'], A_1,
                           num_rels=num_rels, relu=False,
                           compute_dtype=compute_dtype, adj_dtype=adj_dtype,
                           out_dtype=jnp.float32)
    return out


# ---------------------------------------------------------------------------
# Pure-JAX reference mirroring the torch einsum / view / mm path exactly
# ---------------------------------------------------------------------------
def reference_forward(params, X_batch, A_0, A_1, num_rels, embed_size,
                      num_classes):
    W1 = jnp.einsum('rb,beh->reh', params['comp1'], params['bases1'])
    xw = jnp.einsum('ne,reh->rnh', X_batch, W1)
    h1 = jax.nn.relu(
        A_0 @ xw.reshape(num_rels * X_batch.shape[0], embed_size)
        + params['bias1'])
    W2 = jnp.einsum('rb,bhc->rhc', params['comp2'], params['bases2'])
    h2 = jnp.einsum('nh,rhc->rnc', h1, W2).reshape(
        num_rels * h1.shape[0], num_classes)
    return A_1 @ h2 + params['bias2']


# ---------------------------------------------------------------------------
# Deterministic parameter init (xavier-uniform, gain = sqrt(2) like torch relu)
# ---------------------------------------------------------------------------
def xavier_uniform(key, shape, gain):
    if len(shape) == 2:
        fan_out, fan_in = shape[0], shape[1]
    else:
        rf = int(np.prod(shape[2:]))
        fan_out, fan_in = shape[0] * rf, shape[1] * rf
    bound = gain * float(np.sqrt(6.0 / (fan_in + fan_out)))
    return jax.random.uniform(key, shape, jnp.float32, -bound, bound)


if __name__ == "__main__":
    key = jax.random.PRNGKey(0)

    # Module hyper-parameters (small).
    feat_size = 16
    embed_size = 32
    num_classes = 8
    num_rels = 3
    num_bases = 2

    # LADIES mini-batch sizes: N depth-2 sampled nodes feed layer 1,
    # M1 depth-1 sampled nodes feed layer 2, M2 batch/output nodes.
    N, M1, M2 = 6, 5, 4

    gain = float(np.sqrt(2.0))
    keys = jax.random.split(key, 9)
    params = {
        'comp1': xavier_uniform(keys[0], (num_rels, num_bases), gain),
        'bases1': xavier_uniform(keys[1], (num_bases, feat_size, embed_size), gain),
        'comp2': xavier_uniform(keys[2], (num_rels, num_bases), gain),
        'bases2': xavier_uniform(keys[3], (num_bases, embed_size, num_classes), gain),
        # Module inits biases to zero; use small nonzero values here to
        # exercise the bias-add path of the forward.
        'bias1': 0.1 * jax.random.normal(keys[4], (embed_size,), jnp.float32),
        'bias2': 0.1 * jax.random.normal(keys[5], (num_classes,), jnp.float32),
    }

    X_batch = jax.random.normal(keys[6], (N, feat_size), jnp.float32)
    # Dense 0/1 relation-sliced adjacencies (stand-in for sliced sparse COO).
    A_0 = (jax.random.uniform(keys[7], (M1, num_rels * N)) < 0.35).astype(jnp.float32)
    A_1 = (jax.random.uniform(keys[8], (M2, num_rels * M1)) < 0.35).astype(jnp.float32)

    ref = reference_forward(params, X_batch, A_0, A_1, num_rels,
                            embed_size, num_classes)
    ref = jax.block_until_ready(ref)

    # f32 path (exact check).
    out_f32 = mini_batch_ergcn_forward(params, X_batch, [A_0, A_1],
                                       num_rels=num_rels,
                                       compute_dtype=jnp.float32)
    out_f32 = jax.block_until_ready(out_f32)
    np.testing.assert_allclose(np.asarray(out_f32), np.asarray(ref),
                               rtol=1e-5, atol=1e-5)

    # Default bf16 MXU path (f32 accumulation); the 0/1 adjacency is exact in
    # bf16, so only X/W/h1 lose precision -> loose check.
    out_bf16 = mini_batch_ergcn_forward(params, X_batch, [A_0, A_1],
                                        num_rels=num_rels)
    out_bf16 = jax.block_until_ready(out_bf16)
    np.testing.assert_allclose(np.asarray(out_bf16), np.asarray(ref),
                               rtol=1e-1, atol=5e-1)

    print("KERNEL_OK")
</pallas_src>

<mosaic_0001>
module attributes {stable_mosaic.version = 11 : i64} {
  func.func @_proj_kernel(%arg0: i32, %arg1: memref<16x128xf32, #tpu.memory_space<vmem>>, %arg2: memref<3x128x128xf32, #tpu.memory_space<vmem>>, %arg3: memref<128x128xf32, #tpu.memory_space<vmem>>) attributes {dimension_semantics = [#tpu.dimension_semantics<arbitrary>], iteration_bounds = array<i64: 1>, scalar_prefetch = 0 : i64, scratch_operands = 0 : i64, tpu.core_type = #tpu.core_type<tc>, window_params = [{pipeline_mode = #tpu.pipeline_mode<synchronous>, transform_indices = @transform_0, window_bounds = array<i64: 16, 128>}, {pipeline_mode = #tpu.pipeline_mode<synchronous>, transform_indices = @transform_1, window_bounds = array<i64: 3, 128, 128>}, {pipeline_mode = #tpu.pipeline_mode<synchronous>, transform_indices = @transform_2, window_bounds = array<i64: 128, 128>}]} {
    %c0 = arith.constant 0 : index
    %c0_0 = arith.constant 0 : index
    %0 = vector.load %arg1[%c0, %c0_0] : memref<16x128xf32, #tpu.memory_space<vmem>>, vector<16x128xf32>
    %c0_1 = arith.constant 0 : index
    %c0_2 = arith.constant 0 : index
    %c0_3 = arith.constant 0 : index
    %1 = vector.load %arg2[%c0_1, %c0_2, %c0_3] : memref<3x128x128xf32, #tpu.memory_space<vmem>>, vector<1x128x128xf32>
    %2 = vector.shape_cast %1 : vector<1x128x128xf32> to vector<128x128xf32>
    %cst = arith.constant dense<0.000000e+00> : vector<16x128xf32>
    %3 = tpu.matmul %0, %2, %cst {dimension_numbers = #tpu.dot_dimension_numbers<[1], [0], [0], [1], [0, 0, 1, 1], [], []>} : vector<16x128xf32>, vector<128x128xf32>, vector<16x128xf32> -> vector<16x128xf32>
    %c0_4 = arith.constant 0 : index
    %c0_5 = arith.constant 0 : index
    %4 = vector.load %arg3[%c0_4, %c0_5] : memref<128x128xf32, #tpu.memory_space<vmem>>, vector<16x128xf32>
    tpu.vector_store %arg3[%c0_4, %c0_5], %3 {strides = array<i32>} : memref<128x128xf32, #tpu.memory_space<vmem>>, vector<16x128xf32>,
    %c1 = arith.constant 1 : index
    %c0_6 = arith.constant 0 : index
    %c0_7 = arith.constant 0 : index
    %5 = vector.load %arg2[%c1, %c0_6, %c0_7] : memref<3x128x128xf32, #tpu.memory_space<vmem>>, vector<1x128x128xf32>
    %6 = vector.shape_cast %5 : vector<1x128x128xf32> to vector<128x128xf32>
    %cst_8 = arith.constant dense<0.000000e+00> : vector<16x128xf32>
    %7 = tpu.matmul %0, %6, %cst_8 {dimension_numbers = #tpu.dot_dimension_numbers<[1], [0], [0], [1], [0, 0, 1, 1], [], []>} : vector<16x128xf32>, vector<128x128xf32>, vector<16x128xf32> -> vector<16x128xf32>
    %c16 = arith.constant 16 : index
    %c0_9 = arith.constant 0 : index
    %8 = vector.load %arg3[%c16, %c0_9] : memref<128x128xf32, #tpu.memory_space<vmem>>, vector<16x128xf32>
    tpu.vector_store %arg3[%c16, %c0_9], %7 {strides = array<i32>} : memref<128x128xf32, #tpu.memory_space<vmem>>, vector<16x128xf32>,
    %c2 = arith.constant 2 : index
    %c0_10 = arith.constant 0 : index
    %c0_11 = arith.constant 0 : index
    %9 = vector.load %arg2[%c2, %c0_10, %c0_11] : memref<3x128x128xf32, #tpu.memory_space<vmem>>, vector<1x128x128xf32>
    %10 = vector.shape_cast %9 : vector<1x128x128xf32> to vector<128x128xf32>
    %cst_12 = arith.constant dense<0.000000e+00> : vector<16x128xf32>
    %11 = tpu.matmul %0, %10, %cst_12 {dimension_numbers = #tpu.dot_dimension_numbers<[1], [0], [0], [1], [0, 0, 1, 1], [], []>} : vector<16x128xf32>, vector<128x128xf32>, vector<16x128xf32> -> vector<16x128xf32>
    %c32 = arith.constant 32 : index
    %c0_13 = arith.constant 0 : index
    %12 = vector.load %arg3[%c32, %c0_13] : memref<128x128xf32, #tpu.memory_space<vmem>>, vector<16x128xf32>
    tpu.vector_store %arg3[%c32, %c0_13], %11 {strides = array<i32>} : memref<128x128xf32, #tpu.memory_space<vmem>>, vector<16x128xf32>,
    %cst_14 = arith.constant 0.000000e+00 : f32
    %13 = vector.broadcast %cst_14 : f32 to vector<80x128xf32>
    %c48 = arith.constant 48 : index
    %c0_15 = arith.constant 0 : index
    %14 = vector.load %arg3[%c48, %c0_15] : memref<128x128xf32, #tpu.memory_space<vmem>>, vector<80x128xf32>
    tpu.vector_store %arg3[%c48, %c0_15], %13 {strides = array<i32>} : memref<128x128xf32, #tpu.memory_space<vmem>>, vector<80x128xf32>,
    return
  }
  func.func @transform_0(%arg0: i32) -> (i32, i32) {
    %c0_i32 = arith.constant 0 : i32
    %c0_i32_0 = arith.constant 0 : i32
    %c0_i32_1 = arith.constant 0 : i32
    return %c0_i32, %c0_i32_0 : i32, i32
  }
  func.func @transform_1(%arg0: i32) -> (i32, i32, i32) {
    %c0_i32 = arith.constant 0 : i32
    %c0_i32_0 = arith.constant 0 : i32
    %c0_i32_1 = arith.constant 0 : i32
    %c0_i32_2 = arith.constant 0 : i32
    return %c0_i32, %c0_i32_0, %c0_i32_1 : i32, i32, i32
  }
  func.func @transform_2(%arg0: i32) -> (i32, i32) {
    %c0_i32 = arith.constant 0 : i32
    %c0_i32_0 = arith.constant 0 : i32
    %c0_i32_1 = arith.constant 0 : i32
    return %c0_i32, %c0_i32_0 : i32, i32
  }
}

</mosaic_0001>

<llo_original>
// kernel: tpu_custom_call.1
$region0: #{tpu_custom_call.1}
  #allocation0 [shape = 'u32[]', space=smem, size = 0x4, offset = 0x4, fixed_abs, tag = 'smem constant byte address 0x4 - core index']
  #allocation1 [shape = 'u32[144,128]{1,0:T(1,128)}', space=vmem, size = 0x12000, scoped, tag = 'internal scratch']
  %s0 = inlined_call_operand.hbm [shape: f32[16,128], index: 0, kind: input, shape index: {}]
  %s1 = inlined_call_operand.hbm [shape: f32[3,128,128], index: 1, kind: input, shape index: {}]
  %s2 = inlined_call_operand.hbm [shape: f32[128,128], index: 2, kind: output, shape index: {}]
  %s3 = sld [smem:[#allocation0]]
  $region26: #{tpu_custom_call.1} parent=0
    _
  %s5 = ssub.s32 1, %s3
  %s6 = scalar_select 0, %s5, %s3
  $region1: #{tpu_custom_call.1} parent=0
    #allocation2 [shape = 'u8[8192]{0}', space=vmem, size = 0x2000, scoped, tag = 'input window, operand 0, single buffered']
    #allocation3 [shape = 's32[1]{0}', space=sflag, size = 0x4, scoped, tag = 'scoped memory for tpu_custom_call.1']
    #allocation4 [shape = 's32[1]{0}', space=sflag, size = 0x4, scoped, tag = 'scoped memory for tpu_custom_call.1']
    #allocation5 [shape = 'u8[196608]{0}', space=vmem, size = 0x30000, scoped, tag = 'input window, operand 1, single buffered']
    #allocation6 [shape = 's32[1]{0}', space=sflag, size = 0x4, scoped, tag = 'scoped memory for tpu_custom_call.1']
    #allocation7 [shape = 'u8[65536]{0}', space=vmem, size = 0x10000, scoped, tag = 'output window, operand 0, single buffered']
    %7 = vsyncpa [#allocation3], 0
    %8 = vsyncpa [#allocation6], 0
    %9 = vsyncpa [#allocation4], 0
    // Predicated region
    $region2: #{tpu_custom_call.1} parent=1 // pred_check
      _
    $region3: #{tpu_custom_call.1} parent=1 // pred_check_branch
      %11 = sbr.rel (0) target = $region5
    $region4: #{tpu_custom_call.1} parent=1 // pred_region
      %s13 = ssub.s32 256, 256
      %14 = vsyncadd [#allocation3], %s13
      %s15 = sshll.u32 [#allocation2], 4
      %s16 = int_to_ptr.vmem [resolvable:$true] %s15
      %21 = dma.hbm_to_vmem [thread:$0]  %s0, 256, %s16, [#allocation3], 128, 128, 8
    $region5: #{tpu_custom_call.1} parent=1 // pred_fallthru
      _
    // Predicated region
    $region6: #{tpu_custom_call.1} parent=1 // pred_check
      _
    $region7: #{tpu_custom_call.1} parent=1 // pred_check_branch
      %23 = sbr.rel (0) target = $region9
    $region8: #{tpu_custom_call.1} parent=1 // pred_region
      %s25 = ssub.s32 6144, 6144
      %26 = vsyncadd [#allocation6], %s25
      %s27 = sshll.u32 [#allocation5], 4
      %s28 = int_to_ptr.vmem [resolvable:$true] %s27
      %33 = dma.hbm_to_vmem [thread:$0]  %s1, 6144, %s28, [#allocation6], 128, 128, 8
    $region9: #{tpu_custom_call.1} parent=1 // pred_fallthru
      _
    // Predicated region
    $region10: #{tpu_custom_call.1} parent=1 // pred_check
      _
    $region11: #{tpu_custom_call.1} parent=1 // pred_check_branch
      %35 = sbr.rel (0) target = $region13
    $region12: #{tpu_custom_call.1} parent=1 // pred_region
      %36 = dma.done [#allocation3], 256
    $region13: #{tpu_custom_call.1} parent=1 // pred_fallthru
      _
    // Predicated region
    $region14: #{tpu_custom_call.1} parent=1 // pred_check
      _
    $region15: #{tpu_custom_call.1} parent=1 // pred_check_branch
      %38 = sbr.rel (0) target = $region17
    $region16: #{tpu_custom_call.1} parent=1 // pred_region
      %39 = dma.done [#allocation6], 6144
    $region17: #{tpu_custom_call.1} parent=1 // pred_fallthru
      _
    %v40 = vld [vmem:[#allocation2] sm:$0xff]
    %v41 = vld [vmem:[#allocation2 + $0x8] sm:$0xff]
    %v42 = vld [vmem:[#allocation5] sm:$0xff]
    %v43 = vld [vmem:[#allocation5 + $0x8] sm:$0xff]
    %v44 = vld [vmem:[#allocation5 + $0x10] sm:$0xff]
    %v45 = vld [vmem:[#allocation5 + $0x18] sm:$0xff]
    %v46 = vld [vmem:[#allocation5 + $0x20] sm:$0xff]
    %v47 = vld [vmem:[#allocation5 + $0x28] sm:$0xff]
    %v48 = vld [vmem:[#allocation5 + $0x30] sm:$0xff]
    %v49 = vld [vmem:[#allocation5 + $0x38] sm:$0xff]
    %v50 = vld [vmem:[#allocation5 + $0x40] sm:$0xff]
    %v51 = vld [vmem:[#allocation5 + $0x48] sm:$0xff]
    %v52 = vld [vmem:[#allocation5 + $0x50] sm:$0xff]
    %v53 = vld [vmem:[#allocation5 + $0x58] sm:$0xff]
    %v54 = vld [vmem:[#allocation5 + $0x60] sm:$0xff]
    %v55 = vld [vmem:[#allocation5 + $0x68] sm:$0xff]
    %v56 = vld [vmem:[#allocation5 + $0x70] sm:$0xff]
    %v57 = vld [vmem:[#allocation5 + $0x78] sm:$0xff]
    %58 = vmatprep.subr.mxu0 0.0
    %59 = vmatpush1.msra.mxu0 %v42
    %60 = vmatprep.subr.mxu0 0.0
    %61 = vmatpush1.msra.mxu0 %v43
    %62 = vmatprep.subr.mxu0 0.0
    %63 = vmatpush1.msra.mxu0 %v44
    %64 = vmatprep.subr.mxu0 0.0
    %65 = vmatpush1.msra.mxu0 %v45
    %66 = vmatprep.subr.mxu0 0.0
    %67 = vmatpush1.msra.mxu0 %v46
    %68 = vmatprep.subr.mxu0 0.0
    %69 = vmatpush1.msra.mxu0 %v47
    %70 = vmatprep.subr.mxu0 0.0
    %71 = vmatpush1.msra.mxu0 %v48
    %72 = vmatprep.subr.mxu0 0.0
    %73 = vmatpush1.msra.mxu0 %v49
    %74 = vmatprep.subr.mxu0 0.0
    %75 = vmatpush1.msra.mxu0 %v50
    %76 = vmatprep.subr.mxu0 0.0
    %77 = vmatpush1.msra.mxu0 %v51
    %78 = vmatprep.subr.mxu0 0.0
    %79 = vmatpush1.msra.mxu0 %v52
    %80 = vmatprep.subr.mxu0 0.0
    %81 = vmatpush1.msra.mxu0 %v53
    %82 = vmatprep.subr.mxu0 0.0
    %83 = vmatpush1.msra.mxu0 %v54
    %84 = vmatprep.subr.mxu0 0.0
    %85 = vmatpush1.msra.mxu0 %v55
    %86 = vmatprep.subr.mxu0 0.0
    %87 = vmatpush1.msra.mxu0 %v56
    %88 = vmatprep.subr.mxu0 0.0
    %89 = vmatpush1.msra.mxu0 %v57
    %90 = vmatprep.subr.mxu0 0.0
    %91 = vmatpush1.msra.mxu0 0.0
    %92 = vmatprep.subr.mxu0 0.0
    %93 = vmatpush1.msra.mxu0 0.0
    %94 = vmatprep.subr.mxu0 0.0
    %95 = vmatpush1.msra.mxu0 0.0
    %96 = vmatprep.subr.mxu0 0.0
    %97 = vmatpush1.msra.mxu0 0.0
    %98 = vmatprep.subr.mxu0 0.0
    %99 = vmatpush1.msra.mxu0 0.0
    %100 = vmatprep.subr.mxu0 0.0
    %101 = vmatpush1.msra.mxu0 0.0
    %102 = vmatprep.subr.mxu0 0.0
    %103 = vmatpush1.msra.mxu0 0.0
    %104 = vmatprep.subr.mxu0 0.0
    %105 = vmatpush1.msra.mxu0 0.0
    %106 = vmatprep.subr.mxu0 0.0
    %107 = vmatpush1.msra.mxu0 0.0
    %108 = vmatprep.subr.mxu0 0.0
    %109 = vmatpush1.msra.mxu0 0.0
    %110 = vmatprep.subr.mxu0 0.0
    %111 = vmatpush1.msra.mxu0 0.0
    %112 = vmatprep.subr.mxu0 0.0
    %113 = vmatpush1.msra.mxu0 0.0
    %114 = vmatprep.subr.mxu0 0.0
    %115 = vmatpush1.msra.mxu0 0.0
    %116 = vmatprep.subr.mxu0 0.0
    %117 = vmatpush1.msra.mxu0 0.0
    %118 = vmatprep.subr.mxu0 0.0
    %119 = vmatpush1.msra.mxu0 0.0
    %120 = vmatprep.subr.mxu0 0.0
    %121 = vmatpush1.msra.mxu0 0.0
    %122 = vmatprep.mubr.f32.mxu0 0.0
    %123 = vmatmul.mubr.f32.gmra.mrb[0].mxu0 %v40
    %v124 = vpop.f32.mrb[0].mxu0
    %v125 = vadd.f32 0.0, %v124
    %v126 = vpop.f32.mrb[0].mxu0
    %127 = vmatprep.mubr.f32.mxu0 0.0
    %128 = vmatmul.mubr.f32.gmra.mrb[0].mxu0 %v41
    %v129 = vpop.f32.mrb[0].mxu0
    %v130 = vadd.f32 0.0, %v129
    %v131 = vpop.f32.mrb[0].mxu0
    %132 = vdwg.mxu0
    %133 = vst [vmem:[#allocation7] sm:$0xff] %v125
    %134 = vst [vmem:[#allocation7 + $0x8] sm:$0xff] %v130
    %s135 = scalar_lea.vmem [#allocation5], 128
    %v136 = vld [vmem:[%s135] sm:$0xff]
    %v137 = vld [vmem:[%s135 + $0x8] sm:$0xff]
    %v138 = vld [vmem:[%s135 + $0x10] sm:$0xff]
    %v139 = vld [vmem:[%s135 + $0x18] sm:$0xff]
    %v140 = vld [vmem:[%s135 + $0x20] sm:$0xff]
    %v141 = vld [vmem:[%s135 + $0x28] sm:$0xff]
    %v142 = vld [vmem:[%s135 + $0x30] sm:$0xff]
    %v143 = vld [vmem:[%s135 + $0x38] sm:$0xff]
    %v144 = vld [vmem:[%s135 + $0x40] sm:$0xff]
    %v145 = vld [vmem:[%s135 + $0x48] sm:$0xff]
    %v146 = vld [vmem:[%s135 + $0x50] sm:$0xff]
    %v147 = vld [vmem:[%s135 + $0x58] sm:$0xff]
    %v148 = vld [vmem:[%s135 + $0x60] sm:$0xff]
    %v149 = vld [vmem:[%s135 + $0x68] sm:$0xff]
    %v150 = vld [vmem:[%s135 + $0x70] sm:$0xff]
    %v151 = vld [vmem:[%s135 + $0x78] sm:$0xff]
    %152 = vmatprep.subr.mxu0 0.0
    %153 = vmatpush1.msra.mxu0 %v136
    %154 = vmatprep.subr.mxu0 0.0
    %155 = vmatpush1.msra.mxu0 %v137
    %156 = vmatprep.subr.mxu0 0.0
    %157 = vmatpush1.msra.mxu0 %v138
    %158 = vmatprep.subr.mxu0 0.0
    %159 = vmatpush1.msra.mxu0 %v139
    %160 = vmatprep.subr.mxu0 0.0
    %161 = vmatpush1.msra.mxu0 %v140
    %162 = vmatprep.subr.mxu0 0.0
    %163 = vmatpush1.msra.mxu0 %v141
    %164 = vmatprep.subr.mxu0 0.0
    %165 = vmatpush1.msra.mxu0 %v142
    %166 = vmatprep.subr.mxu0 0.0
    %167 = vmatpush1.msra.mxu0 %v143
    %168 = vmatprep.subr.mxu0 0.0
    %169 = vmatpush1.msra.mxu0 %v144
    %170 = vmatprep.subr.mxu0 0.0
    %171 = vmatpush1.msra.mxu0 %v145
    %172 = vmatprep.subr.mxu0 0.0
    %173 = vmatpush1.msra.mxu0 %v146
    %174 = vmatprep.subr.mxu0 0.0
    %175 = vmatpush1.msra.mxu0 %v147
    %176 = vmatprep.subr.mxu0 0.0
    %177 = vmatpush1.msra.mxu0 %v148
    %178 = vmatprep.subr.mxu0 0.0
    %179 = vmatpush1.msra.mxu0 %v149
    %180 = vmatprep.subr.mxu0 0.0
    %181 = vmatpush1.msra.mxu0 %v150
    %182 = vmatprep.subr.mxu0 0.0
    %183 = vmatpush1.msra.mxu0 %v151
    %184 = vmatprep.subr.mxu0 0.0
    %185 = vmatpush1.msra.mxu0 0.0
    %186 = vmatprep.subr.mxu0 0.0
    %187 = vmatpush1.msra.mxu0 0.0
    %188 = vmatprep.subr.mxu0 0.0
    %189 = vmatpush1.msra.mxu0 0.0
    %190 = vmatprep.subr.mxu0 0.0
    %191 = vmatpush1.msra.mxu0 0.0
    %192 = vmatprep.subr.mxu0 0.0
    %193 = vmatpush1.msra.mxu0 0.0
    %194 = vmatprep.subr.mxu0 0.0
    %195 = vmatpush1.msra.mxu0 0.0
    %196 = vmatprep.subr.mxu0 0.0
    %197 = vmatpush1.msra.mxu0 0.0
    %198 = vmatprep.subr.mxu0 0.0
    %199 = vmatpush1.msra.mxu0 0.0
    %200 = vmatprep.subr.mxu0 0.0
    %201 = vmatpush1.msra.mxu0 0.0
    %202 = vmatprep.subr.mxu0 0.0
    %203 = vmatpush1.msra.mxu0 0.0
    %204 = vmatprep.subr.mxu0 0.0
    %205 = vmatpush1.msra.mxu0 0.0
    %206 = vmatprep.subr.mxu0 0.0
    %207 = vmatpush1.msra.mxu0 0.0
    %208 = vmatprep.subr.mxu0 0.0
    %209 = vmatpush1.msra.mxu0 0.0
    %210 = vmatprep.subr.mxu0 0.0
    %211 = vmatpush1.msra.mxu0 0.0
    %212 = vmatprep.subr.mxu0 0.0
    %213 = vmatpush1.msra.mxu0 0.0
    %214 = vmatprep.subr.mxu0 0.0
    %215 = vmatpush1.msra.mxu0 0.0
    %216 = vmatprep.mubr.f32.mxu0 0.0
    %217 = vmatmul.mubr.f32.gmra.mrb[0].mxu0 %v40
    %v218 = vpop.f32.mrb[0].mxu0
    %v219 = vadd.f32 0.0, %v218
    %v220 = vpop.f32.mrb[0].mxu0
    %221 = vmatprep.mubr.f32.mxu0 0.0
    %222 = vmatmul.mubr.f32.gmra.mrb[0].mxu0 %v41
    %v223 = vpop.f32.mrb[0].mxu0
    %v224 = vadd.f32 0.0, %v223
    %v225 = vpop.f32.mrb[0].mxu0
    %226 = vdwg.mxu0
    %227 = vst [vmem:[#allocation7 + $0x10] sm:$0xff] %v219
    %228 = vst [vmem:[#allocation7 + $0x18] sm:$0xff] %v224
    %s229 = scalar_lea.vmem [#allocation5], 256
    %v230 = vld [vmem:[%s229] sm:$0xff]
    %v231 = vld [vmem:[%s229 + $0x8] sm:$0xff]
    %v232 = vld [vmem:[%s229 + $0x10] sm:$0xff]
    %v233 = vld [vmem:[%s229 + $0x18] sm:$0xff]
    %v234 = vld [vmem:[%s229 + $0x20] sm:$0xff]
    %v235 = vld [vmem:[%s229 + $0x28] sm:$0xff]
    %v236 = vld [vmem:[%s229 + $0x30] sm:$0xff]
    %v237 = vld [vmem:[%s229 + $0x38] sm:$0xff]
    %v238 = vld [vmem:[%s229 + $0x40] sm:$0xff]
    %v239 = vld [vmem:[%s229 + $0x48] sm:$0xff]
    %v240 = vld [vmem:[%s229 + $0x50] sm:$0xff]
    %v241 = vld [vmem:[%s229 + $0x58] sm:$0xff]
    %v242 = vld [vmem:[%s229 + $0x60] sm:$0xff]
    %v243 = vld [vmem:[%s229 + $0x68] sm:$0xff]
    %v244 = vld [vmem:[%s229 + $0x70] sm:$0xff]
    %v245 = vld [vmem:[%s229 + $0x78] sm:$0xff]
    %246 = vmatprep.subr.mxu0 0.0
    %247 = vmatpush1.msra.mxu0 %v230
    %248 = vmatprep.subr.mxu0 0.0
    %249 = vmatpush1.msra.mxu0 %v231
    %250 = vmatprep.subr.mxu0 0.0
    %251 = vmatpush1.msra.mxu0 %v232
    %252 = vmatprep.subr.mxu0 0.0
    %253 = vmatpush1.msra.mxu0 %v233
    %254 = vmatprep.subr.mxu0 0.0
    %255 = vmatpush1.msra.mxu0 %v234
    %256 = vmatprep.subr.mxu0 0.0
    %257 = vmatpush1.msra.mxu0 %v235
    %258 = vmatprep.subr.mxu0 0.0
    %259 = vmatpush1.msra.mxu0 %v236
    %260 = vmatprep.subr.mxu0 0.0
    %261 = vmatpush1.msra.mxu0 %v237
    %262 = vmatprep.subr.mxu0 0.0
    %263 = vmatpush1.msra.mxu0 %v238
    %264 = vmatprep.subr.mxu0 0.0
    %265 = vmatpush1.msra.mxu0 %v239
    %266 = vmatprep.subr.mxu0 0.0
    %267 = vmatpush1.msra.mxu0 %v240
    %268 = vmatprep.subr.mxu0 0.0
    %269 = vmatpush1.msra.mxu0 %v241
    %270 = vmatprep.subr.mxu0 0.0
    %271 = vmatpush1.msra.mxu0 %v242
    %272 = vmatprep.subr.mxu0 0.0
    %273 = vmatpush1.msra.mxu0 %v243
    %274 = vmatprep.subr.mxu0 0.0
    %275 = vmatpush1.msra.mxu0 %v244
    %276 = vmatprep.subr.mxu0 0.0
    %277 = vmatpush1.msra.mxu0 %v245
    %278 = vmatprep.subr.mxu0 0.0
    %279 = vmatpush1.msra.mxu0 0.0
    %280 = vmatprep.subr.mxu0 0.0
    %281 = vmatpush1.msra.mxu0 0.0
    %282 = vmatprep.subr.mxu0 0.0
    %283 = vmatpush1.msra.mxu0 0.0
    %284 = vmatprep.subr.mxu0 0.0
    %285 = vmatpush1.msra.mxu0 0.0
    %286 = vmatprep.subr.mxu0 0.0
    %287 = vmatpush1.msra.mxu0 0.0
    %288 = vmatprep.subr.mxu0 0.0
    %289 = vmatpush1.msra.mxu0 0.0
    %290 = vmatprep.subr.mxu0 0.0
    %291 = vmatpush1.msra.mxu0 0.0
    %292 = vmatprep.subr.mxu0 0.0
    %293 = vmatpush1.msra.mxu0 0.0
    %294 = vmatprep.subr.mxu0 0.0
    %295 = vmatpush1.msra.mxu0 0.0
    %296 = vmatprep.subr.mxu0 0.0
    %297 = vmatpush1.msra.mxu0 0.0
    %298 = vmatprep.subr.mxu0 0.0
    %299 = vmatpush1.msra.mxu0 0.0
    %300 = vmatprep.subr.mxu0 0.0
    %301 = vmatpush1.msra.mxu0 0.0
    %302 = vmatprep.subr.mxu0 0.0
    %303 = vmatpush1.msra.mxu0 0.0
    %304 = vmatprep.subr.mxu0 0.0
    %305 = vmatpush1.msra.mxu0 0.0
    %306 = vmatprep.subr.mxu0 0.0
    %307 = vmatpush1.msra.mxu0 0.0
    %308 = vmatprep.subr.mxu0 0.0
    %309 = vmatpush1.msra.mxu0 0.0
    %310 = vmatprep.mubr.f32.mxu0 0.0
    %311 = vmatmul.mubr.f32.gmra.mrb[0].mxu0 %v40
    %v312 = vpop.f32.mrb[0].mxu0
    %v313 = vadd.f32 0.0, %v312
    %v314 = vpop.f32.mrb[0].mxu0
    %315 = vmatprep.mubr.f32.mxu0 0.0
    %316 = vmatmul.mubr.f32.gmra.mrb[0].mxu0 %v41
    %v317 = vpop.f32.mrb[0].mxu0
    %v318 = vadd.f32 0.0, %v317
    %v319 = vpop.f32.mrb[0].mxu0
    %320 = vdwg.mxu0
    %321 = vst [vmem:[#allocation7 + $0x20] sm:$0xff] %v313
    %322 = vst [vmem:[#allocation7 + $0x28] sm:$0xff] %v318
    %323 = vst [vmem:[#allocation7 + $0x30] sm:$0xff] 0.0
    %324 = vst [vmem:[#allocation7 + $0x38] sm:$0xff] 0.0
    %325 = vst [vmem:[#allocation7 + $0x40] sm:$0xff] 0.0
    %326 = vst [vmem:[#allocation7 + $0x48] sm:$0xff] 0.0
    %327 = vst [vmem:[#allocation7 + $0x50] sm:$0xff] 0.0
    %328 = vst [vmem:[#allocation7 + $0x58] sm:$0xff] 0.0
    %329 = vst [vmem:[#allocation7 + $0x60] sm:$0xff] 0.0
    %330 = vst [vmem:[#allocation7 + $0x68] sm:$0xff] 0.0
    %331 = vst [vmem:[#allocation7 + $0x70] sm:$0xff] 0.0
    %332 = vst [vmem:[#allocation7 + $0x78] sm:$0xff] 0.0
    // Predicated region
    $region18: #{tpu_custom_call.1} parent=1 // pred_check
      _
    $region19: #{tpu_custom_call.1} parent=1 // pred_check_branch
      %334 = sbr.rel (0) target = $region21
    $region20: #{tpu_custom_call.1} parent=1 // pred_region
      %s336 = ssub.s32 2048, 2048
      %337 = vsyncadd [#allocation4], %s336
      %s338 = sshll.u32 [#allocation7], 4
      %s339 = int_to_ptr.vmem [resolvable:$true] %s338
      %344 = dma.vmem_to_hbm [thread:$0]  %s339, 2048, %s2, [#allocation4], 128, 128, 8
    $region21: #{tpu_custom_call.1} parent=1 // pred_fallthru
      _
    // Predicated region
    $region22: #{tpu_custom_call.1} parent=1 // pred_check
      _
    $region23: #{tpu_custom_call.1} parent=1 // pred_check_branch
      %346 = sbr.rel (0) target = $region25
    $region24: #{tpu_custom_call.1} parent=1 // pred_region
      %347 = dma.done [#allocation4], 2048
    $region25: #{tpu_custom_call.1} parent=1 // pred_fallthru
      _
    %348 = vsyncpa [#allocation3], 1
    %349 = vsyncpa [#allocation6], 1
    %350 = vsyncpa [#allocation4], 1

</llo_original>
